<compile_context>
chip_gen: v5e
topology: v5e:2x2
jax: 0.10.0
libtpu: 0.0.40
codegen_flags: <defaults>
</compile_context>

<pallas_src>
import math
import functools

import jax
import jax.numpy as jnp
from jax import lax
from jax.experimental import pallas as pl
from jax.experimental.pallas import tpu as pltpu


# Finite "-inf" so exp(m_prev - m_new) never produces NaN on the first block.
_NEG_INF = -1.0e30


def _online_softmax_step(q, k, v, mask, o_ref, m_sc, l_sc, acc_sc, *,
                         scale, compute_dtype):
    """One (q-tile, kv-tile) step of flash attention with VMEM accumulators."""
    kv_idx = pl.program_id(3)

    @pl.when(kv_idx == 0)
    def _():
        m_sc[...] = jnp.full_like(m_sc, _NEG_INF)
        l_sc[...] = jnp.zeros_like(l_sc)
        acc_sc[...] = jnp.zeros_like(acc_sc)

    # Fold the 1/sqrt(head_dim) scale into q (cheaper than scaling the logits).
    q_s = (q.astype(jnp.float32) * scale).astype(compute_dtype)
    k_c = k.astype(compute_dtype)

    # s = q @ k^T  -> (tq, tk), accumulated in f32 on the MXU.
    s = lax.dot_general(
        q_s, k_c, (((1,), (1,)), ((), ())), preferred_element_type=jnp.float32
    )
    if mask is not None:
        s = s + mask.astype(jnp.float32)

    # Online (streaming) softmax update.
    m_prev = m_sc[...]
    m_new = jnp.maximum(m_prev, jnp.max(s, axis=-1, keepdims=True))
    alpha = jnp.exp(m_prev - m_new)
    p = jnp.exp(s - m_new)
    l_sc[...] = alpha * l_sc[...] + jnp.sum(p, axis=-1, keepdims=True)
    acc_sc[...] = alpha * acc_sc[...] + jnp.dot(
        p.astype(compute_dtype), v.astype(compute_dtype),
        preferred_element_type=jnp.float32)
    m_sc[...] = m_new

    @pl.when(kv_idx == pl.num_programs(3) - 1)
    def _():
        approx = jnp.dtype(compute_dtype) != jnp.dtype(jnp.float32)
        inv_l = pl.reciprocal(l_sc[...], approx=approx)
        o_ref[...] = (acc_sc[...] * inv_l).astype(o_ref.dtype)


def _flash_kernel(q_ref, k_ref, v_ref, o_ref, m_sc, l_sc, acc_sc, *,
                  scale, compute_dtype):
    _online_softmax_step(q_ref[...], k_ref[...], v_ref[...], None,
                         o_ref, m_sc, l_sc, acc_sc,
                         scale=scale, compute_dtype=compute_dtype)


def _flash_kernel_masked(q_ref, k_ref, v_ref, mask_ref, o_ref,
                         m_sc, l_sc, acc_sc, *, scale, compute_dtype):
    _online_softmax_step(q_ref[...], k_ref[...], v_ref[...], mask_ref[...],
                         o_ref, m_sc, l_sc, acc_sc,
                         scale=scale, compute_dtype=compute_dtype)


def _pick_tile(dim, cap):
    """Largest power-of-two tile <= cap that divides dim; else the full dim."""
    t = cap
    while t >= 8:
        if dim % t == 0:
            return t
        t //= 2
    return dim


def softmax_attention(q, k, v, mask=None, head_dim=None, *,
                      q_tile=128, kv_tile=256, compute_dtype=jnp.bfloat16):
    """Pallas equivalent of SoftmaxAttention.forward(q, k, v, mask)."""
    B, H, L, D = q.shape
    M = k.shape[2]
    if head_dim is None:
        head_dim = D
    scale = 1.0 / math.sqrt(head_dim)

    tq = _pick_tile(L, q_tile)
    tk = _pick_tile(M, kv_tile)
    grid = (B, H, L // tq, M // tk)

    # TODO(synk): when D < 128, pack several heads per block so the output
    # last dim is lane-dense (avoids masked vst.msk partial stores).
    q_spec = pl.BlockSpec((None, None, tq, D), lambda b, h, qi, ki: (b, h, qi, 0))
    k_spec = pl.BlockSpec((None, None, tk, D), lambda b, h, qi, ki: (b, h, ki, 0))
    v_spec = pl.BlockSpec((None, None, tk, D), lambda b, h, qi, ki: (b, h, ki, 0))
    o_spec = pl.BlockSpec((None, None, tq, D), lambda b, h, qi, ki: (b, h, qi, 0))

    scratch = [
        pltpu.VMEM((tq, 1), jnp.float32),   # running max  m_i
        pltpu.VMEM((tq, 1), jnp.float32),   # running sum  l_i
        pltpu.VMEM((tq, D), jnp.float32),   # output accumulator
    ]

    # Advisory cost estimate for the surrounding XLA schedule.
    flops = 4 * B * H * L * M * D                     # QK^T + PV matmuls
    transcendentals = B * H * L * M                   # exp
    bytes_accessed = (q.size * q.dtype.itemsize + k.size * k.dtype.itemsize +
                      v.size * v.dtype.itemsize + B * H * L * D * q.dtype.itemsize)

    if mask is None:
        kernel = functools.partial(_flash_kernel, scale=scale,
                                   compute_dtype=compute_dtype)
        in_specs = [q_spec, k_spec, v_spec]
        args = (q, k, v)
    else:
        # Keep the mask in its natural (possibly singleton-broadcast) shape;
        # never materialize a (B, H, L, M) tensor in HBM.
        mask = jnp.asarray(mask)
        if mask.ndim < 4:
            mask = mask.reshape((1,) * (4 - mask.ndim) + mask.shape)
        mB, mH = mask.shape[0], mask.shape[1]
        assert mask.shape[2] == L and mask.shape[3] == M, "mask must cover (L, M)"

        def mask_map(b, h, qi, ki):
            return (b if mB > 1 else 0, h if mH > 1 else 0, qi, ki)

        m_spec = pl.BlockSpec((None, None, tq, tk), mask_map)
        bytes_accessed += mB * mH * L * M * mask.dtype.itemsize
        kernel = functools.partial(_flash_kernel_masked, scale=scale,
                                   compute_dtype=compute_dtype)
        in_specs = [q_spec, k_spec, v_spec, m_spec]
        args = (q, k, v, mask)

    grid_spec = pltpu.PrefetchScalarGridSpec(
        num_scalar_prefetch=0,
        grid=grid,
        in_specs=in_specs,
        out_specs=o_spec,
        scratch_shapes=scratch,
    )

    return pl.pallas_call(
        kernel,
        out_shape=jax.ShapeDtypeStruct((B, H, L, D), q.dtype),
        grid_spec=grid_spec,
        compiler_params=pltpu.CompilerParams(
            # q-tile axis stays parallel so megacore (v7x) shards across TCs;
            # the KV reduction axis is last and "arbitrary".
            dimension_semantics=("parallel", "parallel", "parallel", "arbitrary"),
            vmem_limit_bytes=32 * 1024 * 1024,
        ),
        cost_estimate=pl.CostEstimate(
            flops=flops,
            transcendentals=transcendentals,
            bytes_accessed=bytes_accessed),
    )(*args)


def _reference(q, k, v, mask, head_dim):
    logit = jnp.einsum("bhld,bhmd->bhlm", q, k) / math.sqrt(head_dim)
    if mask is not None:
        logit = logit + mask
    w = jax.nn.softmax(logit, axis=-1)
    return jnp.einsum("bhlm,bhmd->bhld", w, v)


if __name__ == "__main__":
    B, H, L, M, D = 2, 4, 8, 8, 32
    key = jax.random.PRNGKey(0)
    kq, kk, kv = jax.random.split(key, 3)
    q = jax.random.normal(kq, (B, H, L, D), dtype=jnp.float32)
    k = jax.random.normal(kk, (B, H, M, D), dtype=jnp.float32)
    v = jax.random.normal(kv, (B, H, M, D), dtype=jnp.float32)

    ref = _reference(q, k, v, None, D)

    # 1) Exact f32 compute path — validates the online-softmax algorithm.
    out_f32 = softmax_attention(q, k, v, mask=None, head_dim=D,
                                compute_dtype=jnp.float32)
    out_f32 = jax.block_until_ready(out_f32)
    assert jnp.allclose(out_f32, ref, atol=1e-5, rtol=1e-5), "f32 path mismatch"

    # 2) Default perf path (bf16 MXU operands, f32 accumulation).
    out_bf16 = softmax_attention(q, k, v, mask=None, head_dim=D)
    out_bf16 = jax.block_until_ready(out_bf16)
    assert jnp.allclose(out_bf16, ref, atol=5e-2, rtol=5e-2), "bf16 path mismatch"

    # 3) Masked path: additive causal mask kept at (1, 1, L, M) — it is never
    #    broadcast to (B, H, L, M) in HBM.
    causal = jnp.where(
        jnp.arange(L)[:, None] >= jnp.arange(M)[None, :], 0.0, -1e9
    ).astype(jnp.float32)
    mask = causal[None, None]
    out_m = softmax_attention(q, k, v, mask=mask, head_dim=D,
                              compute_dtype=jnp.float32)
    out_m = jax.block_until_ready(out_m)
    ref_m = _reference(q, k, v, mask, D)
    assert jnp.allclose(out_m, ref_m, atol=1e-5, rtol=1e-5), "masked mismatch"

    print("KERNEL_OK")
</pallas_src>

<mosaic_0001>
module attributes {stable_mosaic.version = 11 : i64} {
  func.func @_flash_kernel(%arg0: i32, %arg1: i32, %arg2: i32, %arg3: i32, %arg4: memref<1x1x8x32xf32, #tpu.memory_space<vmem>>, %arg5: memref<1x1x8x32xf32, #tpu.memory_space<vmem>>, %arg6: memref<1x1x8x32xf32, #tpu.memory_space<vmem>>, %arg7: memref<1x1x8x32xf32, #tpu.memory_space<vmem>>, %arg8: memref<8x1xf32, #tpu.memory_space<vmem>>, %arg9: memref<8x1xf32, #tpu.memory_space<vmem>>, %arg10: memref<8x32xf32, #tpu.memory_space<vmem>>) attributes {dimension_semantics = [#tpu.dimension_semantics<parallel>, #tpu.dimension_semantics<parallel>, #tpu.dimension_semantics<parallel>, #tpu.dimension_semantics<arbitrary>], iteration_bounds = array<i64: 2, 4, 1, 1>, scalar_prefetch = 0 : i64, scratch_operands = 3 : i64, tpu.core_type = #tpu.core_type<tc>, window_params = [{transform_indices = @transform_0, window_bounds = array<i64: 1, 1, 8, 32>}, {transform_indices = @transform_1, window_bounds = array<i64: 1, 1, 8, 32>}, {transform_indices = @transform_2, window_bounds = array<i64: 1, 1, 8, 32>}, {transform_indices = @transform_3, window_bounds = array<i64: 1, 1, 8, 32>}]} {
    %c0 = arith.constant 0 : index
    %c0_0 = arith.constant 0 : index
    %c0_1 = arith.constant 0 : index
    %c0_2 = arith.constant 0 : index
    %0 = vector.load %arg4[%c0, %c0_0, %c0_1, %c0_2] : memref<1x1x8x32xf32, #tpu.memory_space<vmem>>, vector<1x1x8x32xf32>
    %1 = vector.shape_cast %0 : vector<1x1x8x32xf32> to vector<8x32xf32>
    %c0_3 = arith.constant 0 : index
    %c0_4 = arith.constant 0 : index
    %c0_5 = arith.constant 0 : index
    %c0_6 = arith.constant 0 : index
    %2 = vector.load %arg5[%c0_3, %c0_4, %c0_5, %c0_6] : memref<1x1x8x32xf32, #tpu.memory_space<vmem>>, vector<1x1x8x32xf32>
    %3 = vector.shape_cast %2 : vector<1x1x8x32xf32> to vector<8x32xf32>
    %c0_7 = arith.constant 0 : index
    %c0_8 = arith.constant 0 : index
    %c0_9 = arith.constant 0 : index
    %c0_10 = arith.constant 0 : index
    %4 = vector.load %arg6[%c0_7, %c0_8, %c0_9, %c0_10] : memref<1x1x8x32xf32, #tpu.memory_space<vmem>>, vector<1x1x8x32xf32>
    %5 = vector.shape_cast %4 : vector<1x1x8x32xf32> to vector<8x32xf32>
    %c0_i32 = arith.constant 0 : i32
    %6 = arith.cmpi eq, %arg3, %c0_i32 : i32
    %7 = arith.extui %6 : i1 to i32
    %c0_i32_11 = arith.constant 0 : i32
    %8 = arith.cmpi ne, %7, %c0_i32_11 : i32
    scf.if %8 {
      %cst_30 = arith.constant -1.000000e+30 : f32
      %37 = vector.broadcast %cst_30 : f32 to vector<8x1xf32>
      %c0_31 = arith.constant 0 : index
      %c0_32 = arith.constant 0 : index
      %38 = vector.load %arg8[%c0_31, %c0_32] : memref<8x1xf32, #tpu.memory_space<vmem>>, vector<8x1xf32>
      tpu.vector_store %arg8[%c0_31, %c0_32], %37 {strides = array<i32>} : memref<8x1xf32, #tpu.memory_space<vmem>>, vector<8x1xf32>,
      %cst_33 = arith.constant 0.000000e+00 : f32
      %39 = vector.broadcast %cst_33 : f32 to vector<8x1xf32>
      %c0_34 = arith.constant 0 : index
      %c0_35 = arith.constant 0 : index
      %40 = vector.load %arg9[%c0_34, %c0_35] : memref<8x1xf32, #tpu.memory_space<vmem>>, vector<8x1xf32>
      tpu.vector_store %arg9[%c0_34, %c0_35], %39 {strides = array<i32>} : memref<8x1xf32, #tpu.memory_space<vmem>>, vector<8x1xf32>,
      %cst_36 = arith.constant 0.000000e+00 : f32
      %41 = vector.broadcast %cst_36 : f32 to vector<8x32xf32>
      %c0_37 = arith.constant 0 : index
      %c0_38 = arith.constant 0 : index
      %42 = vector.load %arg10[%c0_37, %c0_38] : memref<8x32xf32, #tpu.memory_space<vmem>>, vector<8x32xf32>
      tpu.vector_store %arg10[%c0_37, %c0_38], %41 {strides = array<i32>} : memref<8x32xf32, #tpu.memory_space<vmem>>, vector<8x32xf32>,
    } else {
    }
    %cst = arith.constant 0.176776692 : f32
    %9 = vector.broadcast %cst : f32 to vector<8x32xf32>
    %10 = arith.mulf %1, %9 : vector<8x32xf32>
    %cst_12 = arith.constant dense<0.000000e+00> : vector<8x8xf32>
    %11 = tpu.matmul %10, %3, %cst_12 {dimension_numbers = #tpu.dot_dimension_numbers<[1], [1], [0], [0], [0, 0, 1, 0], [], []>} : vector<8x32xf32>, vector<8x32xf32>, vector<8x8xf32> -> vector<8x8xf32>
    %c0_13 = arith.constant 0 : index
    %c0_14 = arith.constant 0 : index
    %12 = vector.load %arg8[%c0_13, %c0_14] : memref<8x1xf32, #tpu.memory_space<vmem>>, vector<8x1xf32>
    %cst_15 = arith.constant dense<0xFF800000> : vector<8xf32>
    %13 = vector.multi_reduction <maximumf>, %11, %cst_15 [1] : vector<8x8xf32> to vector<8xf32>
    %14 = vector.shape_cast %13 : vector<8xf32> to vector<8x1xf32>
    %15 = arith.maximumf %12, %14 : vector<8x1xf32>
    %16 = arith.subf %12, %15 : vector<8x1xf32>
    %17 = math.exp %16 : vector<8x1xf32>
    %18 = vector.broadcast %15 : vector<8x1xf32> to vector<8x8xf32>
    %19 = arith.subf %11, %18 : vector<8x8xf32>
    %20 = math.exp %19 : vector<8x8xf32>
    %c0_16 = arith.constant 0 : index
    %c0_17 = arith.constant 0 : index
    %21 = vector.load %arg9[%c0_16, %c0_17] : memref<8x1xf32, #tpu.memory_space<vmem>>, vector<8x1xf32>
    %22 = arith.mulf %17, %21 : vector<8x1xf32>
    %cst_18 = arith.constant dense<0.000000e+00> : vector<8xf32>
    %23 = vector.multi_reduction <add>, %20, %cst_18 [1] : vector<8x8xf32> to vector<8xf32>
    %24 = vector.shape_cast %23 : vector<8xf32> to vector<8x1xf32>
    %25 = arith.addf %22, %24 : vector<8x1xf32>
    %c0_19 = arith.constant 0 : index
    %c0_20 = arith.constant 0 : index
    %26 = vector.load %arg9[%c0_19, %c0_20] : memref<8x1xf32, #tpu.memory_space<vmem>>, vector<8x1xf32>
    tpu.vector_store %arg9[%c0_19, %c0_20], %25 {strides = array<i32>} : memref<8x1xf32, #tpu.memory_space<vmem>>, vector<8x1xf32>,
    %c0_21 = arith.constant 0 : index
    %c0_22 = arith.constant 0 : index
    %27 = vector.load %arg10[%c0_21, %c0_22] : memref<8x32xf32, #tpu.memory_space<vmem>>, vector<8x32xf32>
    %28 = vector.broadcast %17 : vector<8x1xf32> to vector<8x32xf32>
    %29 = arith.mulf %28, %27 : vector<8x32xf32>
    %cst_23 = arith.constant dense<0.000000e+00> : vector<8x32xf32>
    %30 = tpu.matmul %20, %5, %cst_23 {dimension_numbers = #tpu.dot_dimension_numbers<[1], [0], [0], [1], [0, 0, 1, 1], [], []>} : vector<8x8xf32>, vector<8x32xf32>, vector<8x32xf32> -> vector<8x32xf32>
    %31 = arith.addf %29, %30 : vector<8x32xf32>
    %c0_24 = arith.constant 0 : index
    %c0_25 = arith.constant 0 : index
    %32 = vector.load %arg10[%c0_24, %c0_25] : memref<8x32xf32, #tpu.memory_space<vmem>>, vector<8x32xf32>
    tpu.vector_store %arg10[%c0_24, %c0_25], %31 {strides = array<i32>} : memref<8x32xf32, #tpu.memory_space<vmem>>, vector<8x32xf32>,
    %c0_26 = arith.constant 0 : index
    %c0_27 = arith.constant 0 : index
    %33 = vector.load %arg8[%c0_26, %c0_27] : memref<8x1xf32, #tpu.memory_space<vmem>>, vector<8x1xf32>
    tpu.vector_store %arg8[%c0_26, %c0_27], %15 {strides = array<i32>} : memref<8x1xf32, #tpu.memory_space<vmem>>, vector<8x1xf32>,
    %c0_i32_28 = arith.constant 0 : i32
    %34 = arith.cmpi eq, %arg3, %c0_i32_28 : i32
    %35 = arith.extui %34 : i1 to i32
    %c0_i32_29 = arith.constant 0 : i32
    %36 = arith.cmpi ne, %35, %c0_i32_29 : i32
    scf.if %36 {
      %c0_30 = arith.constant 0 : index
      %c0_31 = arith.constant 0 : index
      %37 = vector.load %arg9[%c0_30, %c0_31] : memref<8x1xf32, #tpu.memory_space<vmem>>, vector<8x1xf32>
      %38 = tpu.reciprocal %37 : vector<8x1xf32> -> vector<8x1xf32>
      %c0_32 = arith.constant 0 : index
      %c0_33 = arith.constant 0 : index
      %39 = vector.load %arg10[%c0_32, %c0_33] : memref<8x32xf32, #tpu.memory_space<vmem>>, vector<8x32xf32>
      %40 = vector.broadcast %38 : vector<8x1xf32> to vector<8x32xf32>
      %41 = arith.mulf %39, %40 : vector<8x32xf32>
      %c0_34 = arith.constant 0 : index
      %c0_35 = arith.constant 0 : index
      %c0_36 = arith.constant 0 : index
      %c0_37 = arith.constant 0 : index
      %42 = vector.load %arg7[%c0_34, %c0_35, %c0_36, %c0_37] : memref<1x1x8x32xf32, #tpu.memory_space<vmem>>, vector<1x1x8x32xf32>
      %43 = vector.shape_cast %42 : vector<1x1x8x32xf32> to vector<8x32xf32>
      %44 = vector.shape_cast %41 : vector<8x32xf32> to vector<1x1x8x32xf32>
      tpu.vector_store %arg7[%c0_34, %c0_35, %c0_36, %c0_37], %44 {strides = array<i32>} : memref<1x1x8x32xf32, #tpu.memory_space<vmem>>, vector<1x1x8x32xf32>,
    } else {
    }
    return
  }
  func.func @transform_0(%arg0: i32, %arg1: i32, %arg2: i32, %arg3: i32) -> (i32, i32, i32, i32) {
    %c0_i32 = arith.constant 0 : i32
    %c0_i32_0 = arith.constant 0 : i32
    return %arg0, %arg1, %arg2, %c0_i32 : i32, i32, i32, i32
  }
  func.func @transform_1(%arg0: i32, %arg1: i32, %arg2: i32, %arg3: i32) -> (i32, i32, i32, i32) {
    %c0_i32 = arith.constant 0 : i32
    %c0_i32_0 = arith.constant 0 : i32
    return %arg0, %arg1, %arg3, %c0_i32 : i32, i32, i32, i32
  }
  func.func @transform_2(%arg0: i32, %arg1: i32, %arg2: i32, %arg3: i32) -> (i32, i32, i32, i32) {
    %c0_i32 = arith.constant 0 : i32
    %c0_i32_0 = arith.constant 0 : i32
    return %arg0, %arg1, %arg3, %c0_i32 : i32, i32, i32, i32
  }
  func.func @transform_3(%arg0: i32, %arg1: i32, %arg2: i32, %arg3: i32) -> (i32, i32, i32, i32) {
    %c0_i32 = arith.constant 0 : i32
    %c0_i32_0 = arith.constant 0 : i32
    return %arg0, %arg1, %arg2, %c0_i32 : i32, i32, i32, i32
  }
}

</mosaic_0001>

<llo_original>
// kernel: tpu_custom_call.1
$region0: #{tpu_custom_call.1}
  #allocation0 [shape = 'u32[]', space=smem, size = 0x4, offset = 0x4, fixed_abs, tag = 'smem constant byte address 0x4 - core index']
  #allocation1 [shape = 'u32[72,128]{1,0:T(1,128)}', space=vmem, size = 0x9000, scoped, tag = 'internal scratch']
  #allocation2 [shape = 'f32[8,1]{1,0:T(8,128)}', space=vmem, size = 0x1000, scoped, tag = 'scratch operand']
  #allocation3 [shape = 'f32[8,1]{1,0:T(8,128)}', space=vmem, size = 0x1000, scoped, tag = 'scratch operand']
  #allocation4 [shape = 'f32[8,32]{1,0:T(8,128)}', space=vmem, size = 0x1000, scoped, tag = 'scratch operand']
  %s0 = inlined_call_operand.hbm [shape: f32[2,4,8,32], index: 0, kind: input, shape index: {}]
  %s1 = inlined_call_operand.hbm [shape: f32[2,4,8,32], index: 1, kind: input, shape index: {}]
  %s2 = inlined_call_operand.hbm [shape: f32[2,4,8,32], index: 2, kind: input, shape index: {}]
  %s3 = inlined_call_operand.hbm [shape: f32[2,4,8,32], index: 3, kind: output, shape index: {}]
  %s4 = sld [smem:[#allocation0]]
  $region65: #{tpu_custom_call.1} parent=0
    _
  %s6 = ssub.s32 1, %s4
  %s7 = scalar_select 0, %s6, %s4
  $region1: #{tpu_custom_call.1} parent=0
    #allocation5 [shape = 'u8[8192]{0}', space=vmem, size = 0x2000, scoped, tag = 'input window, operand 0']
    #allocation6 [shape = 's32[2]{0}', space=sflag, size = 0x8, scoped, tag = 'scoped memory for tpu_custom_call.1']
    #allocation7 [shape = 's32[2]{0}', space=sflag, size = 0x8, scoped, tag = 'scoped memory for tpu_custom_call.1']
    #allocation8 [shape = 'u8[8192]{0}', space=vmem, size = 0x2000, scoped, tag = 'input window, operand 1']
    #allocation9 [shape = 's32[2]{0}', space=sflag, size = 0x8, scoped, tag = 'scoped memory for tpu_custom_call.1']
    #allocation10 [shape = 'u8[8192]{0}', space=vmem, size = 0x2000, scoped, tag = 'input window, operand 2']
    #allocation11 [shape = 'u8[8192]{0}', space=vmem, size = 0x2000, scoped, tag = 'output window, operand 0']
    %8 = vsyncpa [#allocation6], 0
    %s9 = scalar_lea.sflag [#allocation6], 1
    %10 = vsyncpa %s9, 0
    %11 = vsyncpa [#allocation9], 0
    %s12 = scalar_lea.sflag [#allocation9], 1
    %13 = vsyncpa %s12, 0
    %14 = vsyncpa [#allocation7], 0
    %s15 = scalar_lea.sflag [#allocation7], 1
    %16 = vsyncpa %s15, 0
    loop: start=0, step=1, limit=10
    $region2: #{tpu_custom_call.1} parent=1 // loop_pre_header
      _
    $region3: #{tpu_custom_call.1} parent=1 // loop_header
      %s18 = sphi 0, %s22
      %p19 = scmp.ge.s32.totalorder %s18, 10
      %s25 = sphi 0, %s51
      %s26 = sphi 0, %s47
      %s27 = sphi 0, %s43
      %s28 = sphi 0, %s39
      %s29 = sphi 0, %s25
      %s30 = sphi 0, %s26
      %s31 = sphi 0, %s27
      %s32 = sphi 0, %s28
      %s33 = sphi 0, %s29
      %s34 = sphi 0, %s30
      %s35 = sphi 0, %s31
      %s36 = sphi 0, %s32
      %s58 = sphi 0, %s60
      %s61 = sphi 0, %s58
      %s62 = sphi 0, %s61
      %s78 = sphi 0, %s62
      %s88 = sphi 0, %s90
      %s91 = sphi 0, %s88
      %s92 = sphi 0, %s91
      %s108 = sphi 0, %s92
      %s118 = sphi 0, %s120
      %s121 = sphi 0, %s118
      %s122 = sphi 0, %s121
      %s138 = sphi 0, %s122
      %s148 = sphi 0, %s150
      %s151 = sphi 0, %s148
      %s152 = sphi 0, %s151
      %s168 = sphi 0, %s152
    $region4: #{tpu_custom_call.1} parent=1 // loop_header_branch
      %21 = sbr.rel (%p19) target = $region8
    $region5: #{tpu_custom_call.1} parent=1 // loop_body
      %s23 = ssub.s32 %s18, 1
      %s24 = ssub.s32 %s18, 2
      %s37 = sadd.s32 1, %s28
      %p38 = scmp.ge.s32.totalorder %s37, 1
      %s39 = scalar_select %p38, 0, %s37
      %s40 = sadd.s32 1, %s27
      %s41 = scalar_select %p38, %s40, %s27
      %p42 = scmp.ge.s32.totalorder %s41, 1
      %s43 = scalar_select %p42, 0, %s41
      %s44 = sadd.s32 1, %s26
      %s45 = scalar_select %p42, %s44, %s26
      %p46 = scmp.ge.s32.totalorder %s45, 4
      %s47 = scalar_select %p46, 0, %s45
      %s48 = sadd.s32 1, %s25
      %s49 = scalar_select %p46, %s48, %s25
      %p50 = scmp.ge.s32.totalorder %s49, 2
      %s51 = scalar_select %p50, 0, %s49
      %s52 = ssub.s32 %s25, %s51
      %s53 = ssub.s32 %s26, %s47
      %s54 = sor.u32 %s52, %s53
      %s55 = ssub.s32 %s27, %s43
      %s56 = sor.u32 %s54, %s55
      %p57 = scmp.eq.s32.totalorder %s56, 0
      %s59 = sadd.s32 %s58, 1
      %s60 = scalar_select %p57, %s58, %s59
      %p63 = pneg %p57
      %p64 = scmp.eq.s32.totalorder %s18, 7
      %p65 = por %p63, %p64
      %p66 = scmp.ne.s32.totalorder %s58, %s61
      %p67 = scmp.eq.s32.totalorder %s18, 0
      %p68 = por %p66, %p67
      %p69 = scmp.ne.s32.totalorder %s58, %s61
      %p70 = scmp.eq.s32.totalorder %s23, 7
      %p71 = por %p69, %p70
      %p72 = scmp.ne.s32.totalorder %s61, %s62
      %p73 = scmp.eq.s32.totalorder %s23, 0
      %p74 = por %p72, %p73
      %p75 = scmp.ne.s32.totalorder %s61, %s62
      %p76 = scmp.eq.s32.totalorder %s24, 7
      %p77 = por %p75, %p76
      %p79 = scmp.ne.s32.totalorder %s62, %s78
      %p80 = scmp.eq.s32.totalorder %s24, 0
      %p81 = por %p79, %p80
      %s82 = ssub.s32 %s25, %s51
      %s83 = ssub.s32 %s26, %s47
      %s84 = sor.u32 %s82, %s83
      %s85 = ssub.s32 %s28, %s39
      %s86 = sor.u32 %s84, %s85
      %p87 = scmp.eq.s32.totalorder %s86, 0
      %s89 = sadd.s32 %s88, 1
      %s90 = scalar_select %p87, %s88, %s89
      %p93 = pneg %p87
      %p94 = scmp.eq.s32.totalorder %s18, 7
      %p95 = por %p93, %p94
      %p96 = scmp.ne.s32.totalorder %s88, %s91
      %p97 = scmp.eq.s32.totalorder %s18, 0
      %p98 = por %p96, %p97
      %p99 = scmp.ne.s32.totalorder %s88, %s91
      %p100 = scmp.eq.s32.totalorder %s23, 7
      %p101 = por %p99, %p100
      %p102 = scmp.ne.s32.totalorder %s91, %s92
      %p103 = scmp.eq.s32.totalorder %s23, 0
      %p104 = por %p102, %p103
      %p105 = scmp.ne.s32.totalorder %s91, %s92
      %p106 = scmp.eq.s32.totalorder %s24, 7
      %p107 = por %p105, %p106
      %p109 = scmp.ne.s32.totalorder %s92, %s108
      %p110 = scmp.eq.s32.totalorder %s24, 0
      %p111 = por %p109, %p110
      %s112 = ssub.s32 %s25, %s51
      %s113 = ssub.s32 %s26, %s47
      %s114 = sor.u32 %s112, %s113
      %s115 = ssub.s32 %s28, %s39
      %s116 = sor.u32 %s114, %s115
      %p117 = scmp.eq.s32.totalorder %s116, 0
      %s119 = sadd.s32 %s118, 1
      %s120 = scalar_select %p117, %s118, %s119
      %p123 = pneg %p117
      %p124 = scmp.eq.s32.totalorder %s18, 7
      %p125 = por %p123, %p124
      %p126 = scmp.ne.s32.totalorder %s118, %s121
      %p127 = scmp.eq.s32.totalorder %s18, 0
      %p128 = por %p126, %p127
      %p129 = scmp.ne.s32.totalorder %s118, %s121
      %p130 = scmp.eq.s32.totalorder %s23, 7
      %p131 = por %p129, %p130
      %p132 = scmp.ne.s32.totalorder %s121, %s122
      %p133 = scmp.eq.s32.totalorder %s23, 0
      %p134 = por %p132, %p133
      %p135 = scmp.ne.s32.totalorder %s121, %s122
      %p136 = scmp.eq.s32.totalorder %s24, 7
      %p137 = por %p135, %p136
      %p139 = scmp.ne.s32.totalorder %s122, %s138
      %p140 = scmp.eq.s32.totalorder %s24, 0
      %p141 = por %p139, %p140
      %s142 = ssub.s32 %s25, %s51
      %s143 = ssub.s32 %s26, %s47
      %s144 = sor.u32 %s142, %s143
      %s145 = ssub.s32 %s27, %s43
      %s146 = sor.u32 %s144, %s145
      %p147 = scmp.eq.s32.totalorder %s146, 0
      %s149 = sadd.s32 %s148, 1
      %s150 = scalar_select %p147, %s148, %s149
      %p153 = pneg %p147
      %p154 = scmp.eq.s32.totalorder %s18, 7
      %p155 = por %p153, %p154
      %p156 = scmp.ne.s32.totalorder %s148, %s151
      %p157 = scmp.eq.s32.totalorder %s18, 0
      %p158 = por %p156, %p157
      %p159 = scmp.ne.s32.totalorder %s148, %s151
      %p160 = scmp.eq.s32.totalorder %s23, 7
      %p161 = por %p159, %p160
      %p162 = scmp.ne.s32.totalorder %s151, %s152
      %p163 = scmp.eq.s32.totalorder %s23, 0
      %p164 = por %p162, %p163
      %p165 = scmp.ne.s32.totalorder %s151, %s152
      %p166 = scmp.eq.s32.totalorder %s24, 7
      %p167 = por %p165, %p166
      %p169 = scmp.ne.s32.totalorder %s152, %s168
      %p170 = scmp.eq.s32.totalorder %s24, 0
      %p171 = por %p169, %p170
      %p172 = scmp.le.s32.totalorder 1, %s18
      %p173 = scmp.lt.s32.totalorder %s18, 9
      %p174 = pnand %p172, %p173
      %p175 = pneg %p174
      // Predicated region
      $region9: #{tpu_custom_call.1} parent=5 // pred_check
        _
      $region10: #{tpu_custom_call.1} parent=5 // pred_check_branch
        %177 = sbr.rel (%p174) target = $region12
      $region11: #{tpu_custom_call.1} parent=5 // pred_region
        %s178 = ssub.s32 %s18, 1
      $region12: #{tpu_custom_call.1} parent=5 // pred_fallthru
        _
      %p179 = scmp.lt.s32.totalorder %s18, 8
      // Predicated region
      $region13: #{tpu_custom_call.1} parent=5 // pred_check
        %p180 = pneg %p179
      $region14: #{tpu_custom_call.1} parent=5 // pred_check_branch
        %182 = sbr.rel (%p180) target = $region16
      $region15: #{tpu_custom_call.1} parent=5 // pred_region
        // Predicated region
        $region17: #{tpu_custom_call.1} parent=15 // pred_check
          %p183 = pneg %p68
        $region18: #{tpu_custom_call.1} parent=15 // pred_check_branch
          %185 = sbr.rel (%p183) target = $region20
        $region19: #{tpu_custom_call.1} parent=15 // pred_region
          %s186 = sand.u32 %s58, 1
          %s187 = scalar_lea.sflag [#allocation6], %s186
          %s188 = sand.u32 %s58, 1
          %s189 = smul.addr %s188, 8
          %s190 = scalar_lea.vmem [#allocation5], %s189
          %192 = vsyncadd %s187, 0
          %s193 = sadd.s32 %s27, %s26
          %s194 = smul.addr %s25, 4
          %s195 = sadd.s32 %s193, %s194
          %s196 = smul.addr %s195, 8
          %s197 = scalar_lea.hbm %s0, %s196
          %s199 = sshll.u32 %s197, 4
          %s200 = int_to_ptr.hbm [resolvable:$true] %s199
          %s201 = sshll.u32 %s190, 4
          %s202 = int_to_ptr.vmem [resolvable:$true] %s201
          %204 = dma.hbm_to_vmem [thread:$0]  %s200, 128, %s202, %s187
        $region20: #{tpu_custom_call.1} parent=15 // pred_fallthru
          _
        // Predicated region
        $region21: #{tpu_custom_call.1} parent=15 // pred_check
          %p205 = pneg %p98
        $region22: #{tpu_custom_call.1} parent=15 // pred_check_branch
          %207 = sbr.rel (%p205) target = $region24
        $region23: #{tpu_custom_call.1} parent=15 // pred_region
          %s208 = sand.u32 %s18, 1
          %s209 = scalar_lea.sflag [#allocation9], %s208
          %s210 = sand.u32 %s88, 1
          %s211 = smul.addr %s210, 8
          %s212 = scalar_lea.vmem [#allocation8], %s211
          %214 = vsyncadd %s209, 0
          %s215 = sadd.s32 %s28, %s26
          %s216 = smul.addr %s25, 4
          %s217 = sadd.s32 %s215, %s216
          %s218 = smul.addr %s217, 8
          %s219 = scalar_lea.hbm %s1, %s218
          %s221 = sshll.u32 %s219, 4
          %s222 = int_to_ptr.hbm [resolvable:$true] %s221
          %s223 = sshll.u32 %s212, 4
          %s224 = int_to_ptr.vmem [resolvable:$true] %s223
          %226 = dma.hbm_to_vmem [thread:$0]  %s222, 128, %s224, %s209
        $region24: #{tpu_custom_call.1} parent=15 // pred_fallthru
          _
        // Predicated region
        $region25: #{tpu_custom_call.1} parent=15 // pred_check
          %p227 = pneg %p128
        $region26: #{tpu_custom_call.1} parent=15 // pred_check_branch
          %229 = sbr.rel (%p227) target = $region28
        $region27: #{tpu_custom_call.1} parent=15 // pred_region
          %s230 = sand.u32 %s18, 1
          %s231 = scalar_lea.sflag [#allocation9], %s230
          %s232 = sand.u32 %s118, 1
          %s233 = smul.addr %s232, 8
          %s234 = scalar_lea.vmem [#allocation10], %s233
          %236 = vsyncadd %s231, 0
          %s237 = sadd.s32 %s28, %s26
          %s238 = smul.addr %s25, 4
          %s239 = sadd.s32 %s237, %s238
          %s240 = smul.addr %s239, 8
          %s241 = scalar_lea.hbm %s2, %s240
          %s243 = sshll.u32 %s241, 4
          %s244 = int_to_ptr.hbm [resolvable:$true] %s243
          %s245 = sshll.u32 %s234, 4
          %s246 = int_to_ptr.vmem [resolvable:$true] %s245
          %248 = dma.hbm_to_vmem [thread:$0]  %s244, 128, %s246, %s231
        $region28: #{tpu_custom_call.1} parent=15 // pred_fallthru
          _
      $region16: #{tpu_custom_call.1} parent=5 // pred_fallthru
        _
      %p249 = scmp.le.s32.totalorder 1, %s18
      %p250 = scmp.lt.s32.totalorder %s18, 9
      %p251 = pnand %p249, %p250
      %p252 = pneg %p251
      // Predicated region
      $region29: #{tpu_custom_call.1} parent=5 // pred_check
        _
      $region30: #{tpu_custom_call.1} parent=5 // pred_check_branch
        %254 = sbr.rel (%p251) target = $region32
      $region31: #{tpu_custom_call.1} parent=5 // pred_region
        %s255 = ssub.s32 %s18, 1
        %s256 = sand.u32 %s61, 1
        %s257 = scalar_lea.sflag [#allocation6], %s256
        %s258 = sand.u32 %s61, 1
        %s259 = smul.addr %s258, 8
        %s260 = scalar_lea.vmem [#allocation5], %s259
        // Predicated region
        $region33: #{tpu_custom_call.1} parent=31 // pred_check
          %p261 = pneg %p74
        $region34: #{tpu_custom_call.1} parent=31 // pred_check_branch
          %263 = sbr.rel (%p261) target = $region36
        $region35: #{tpu_custom_call.1} parent=31 // pred_region
          %265 = dma.done %s257, 128
        $region36: #{tpu_custom_call.1} parent=31 // pred_fallthru
          _
        %s266 = sand.u32 %s23, 1
        %s267 = scalar_lea.sflag [#allocation9], %s266
        %s268 = sand.u32 %s91, 1
        %s269 = smul.addr %s268, 8
        %s270 = scalar_lea.vmem [#allocation8], %s269
        // Predicated region
        $region37: #{tpu_custom_call.1} parent=31 // pred_check
          %p271 = pneg %p104
        $region38: #{tpu_custom_call.1} parent=31 // pred_check_branch
          %273 = sbr.rel (%p271) target = $region40
        $region39: #{tpu_custom_call.1} parent=31 // pred_region
          %275 = dma.done %s267, 128
        $region40: #{tpu_custom_call.1} parent=31 // pred_fallthru
          _
        %s276 = sand.u32 %s23, 1
        %s277 = scalar_lea.sflag [#allocation9], %s276
        %s278 = sand.u32 %s121, 1
        %s279 = smul.addr %s278, 8
        %s280 = scalar_lea.vmem [#allocation10], %s279
        // Predicated region
        $region41: #{tpu_custom_call.1} parent=31 // pred_check
          %p281 = pneg %p134
        $region42: #{tpu_custom_call.1} parent=31 // pred_check_branch
          %283 = sbr.rel (%p281) target = $region44
        $region43: #{tpu_custom_call.1} parent=31 // pred_region
          %285 = dma.done %s277, 128
        $region44: #{tpu_custom_call.1} parent=31 // pred_fallthru
          _
        %s286 = sand.u32 %s61, 1
        %s287 = scalar_lea.sflag [#allocation6], %s286
        %s288 = sand.u32 %s61, 1
        %s289 = smul.addr %s288, 8
        %s290 = scalar_lea.vmem [#allocation5], %s289
        %p291 = pneg %p74
        %p292 = pneg %p71
        %s293 = sand.u32 %s23, 1
        %s294 = scalar_lea.sflag [#allocation9], %s293
        %s295 = sand.u32 %s91, 1
        %s296 = smul.addr %s295, 8
        %s297 = scalar_lea.vmem [#allocation8], %s296
        %p298 = pneg %p104
        %p299 = pneg %p101
        %s300 = sand.u32 %s23, 1
        %s301 = scalar_lea.sflag [#allocation9], %s300
        %s302 = sand.u32 %s121, 1
        %s303 = smul.addr %s302, 8
        %s304 = scalar_lea.vmem [#allocation10], %s303
        %p305 = pneg %p134
        %p306 = pneg %p131
        %p307 = pneg %p164
        %p308 = pneg %p161
        %s309 = sand.u32 %s151, 1
        %s310 = scalar_lea.sflag [#allocation7], %s309
        %s311 = sand.u32 %s151, 1
        %s312 = smul.addr %s311, 8
        %s313 = scalar_lea.vmem [#allocation11], %s312
        %v314 = vld [vmem:[%s260] sm:$0xff]
        %v315 = vld [vmem:[%s270] sm:$0xff]
        %v316 = vld [vmem:[%s280] sm:$0xff]
        %p317 = scmp.eq.s32.totalorder %s32, 0
        // Predicated region
        $region45: #{tpu_custom_call.1} parent=31 // pred_check
          %p318 = pneg %p317
        $region46: #{tpu_custom_call.1} parent=31 // pred_check_branch
          %320 = sbr.rel (%p318) target = $region48
        $region47: #{tpu_custom_call.1} parent=31 // pred_region
          %vm321 = vcmask 7168
          %322 = vst.msk [vmem:[#allocation2] sm:$0xff] %vm321, -1e+30
          %323 = vst.msk [vmem:[#allocation3] sm:$0xff] %vm321, 0.0
          %vm324 = vcmask 261120
          %325 = vst.msk [vmem:[#allocation4] sm:$0xff] %vm324, 0.0
        $region48: #{tpu_custom_call.1} parent=31 // pred_fallthru
          _
        %v326 = vmul.f32 %v314, 0.17677669
        %vm327 = vcmask 261120
        %v329 = vsel %vm327, %v326, 0
        %v332 = vsel %vm327, %v315, 0
        %334 = vmatpush.xpose.msra.mxu0 0.0
        %335 = vmatpush.xpose.msra.mxu0 0.0
        %336 = vmatpush.xpose.msra.mxu0 0.0
        %337 = vmatpush.xpose.msra.mxu0 0.0
        %338 = vmatpush.xpose.msra.mxu0 0.0
        %339 = vmatpush.xpose.msra.mxu0 0.0
        %340 = vmatpush.xpose.msra.mxu0 0.0
        %341 = vmatpush.xpose.msra.mxu0 0.0
        %342 = vmatpush.xpose.msra.mxu0 0.0
        %343 = vmatpush.xpose.msra.mxu0 0.0
        %344 = vmatpush.xpose.msra.mxu0 0.0
        %345 = vmatpush.xpose.msra.mxu0 0.0
        %346 = vmatpush.xpose.msra.mxu0 0.0
        %347 = vmatpush.xpose.msra.mxu0 0.0
        %348 = vmatpush.xpose.msra.mxu0 0.0
        %349 = vmatpush.xpose.msra.mxu0 %v332
        %350 = vmatmul.f32.gmra.mxu0 %v329
        %v351 = vpop.f32.mrf.mxu0
        %v352 = vadd.f32 0.0, %v351
        %353 = vdwg.mxu0
        %v354 = vld [vmem:[#allocation2] sm:$0xff]
        %vm355 = vcmask 64512
        %v356 = vsel %vm355, %v352, -inf
        %357 = vmax.xlane.f32.xlu0 %v356
        %v358 = vpop.xlane.xlu0 %357
        %v359 = vmax.f32 %v354, %v358
        %v360 = vsub.f32 %v354, %v359
        %v361 = vmul.f32 %v360, 1.442695
        %v362 = vpow.pop %v361
        %364 = vset.pattern.permute.xlu0 0
        %365 = vperm.xlu0 %364, %v359
        %v366 = vpop.permute.xlu0 %365
        %v368 = vsub.f32 %v352, %v366
        %v369 = vmul.f32 %v368, 1.442695
        %v370 = vpow.pop %v369
        %v371 = vld [vmem:[#allocation3] sm:$0xff]
        %v372 = vmul.f32 %v362, %v371
        %v373 = vsel %vm355, %v370, 0.0
        %374 = vadd.xlane.f32.xlu0 %v373
        %v375 = vpop.xlane.xlu0 %374
        %v376 = vadd.f32 %v372, %v375
        %vm377 = vcmask 7168
        %378 = vst.msk [vmem:[#allocation3] sm:$0xff] %vm377, %v376
        %v379 = vld [vmem:[#allocation4] sm:$0xff]
        %381 = vset.pattern.permute.xlu0 0
        %382 = vperm.xlu0 %381, %v362
        %v383 = vpop.permute.xlu0 %382
        %v385 = vmul.f32 %v383, %v379
        %v387 = vsel %vm355, %v370, 0
        %389 = vmatpush.msra.mxu0 0.0
        %390 = vmatpush.msra.mxu0 0.0
        %391 = vmatpush.msra.mxu0 0.0
        %392 = vmatpush.msra.mxu0 0.0
        %393 = vmatpush.msra.mxu0 0.0
        %394 = vmatpush.msra.mxu0 0.0
        %395 = vmatpush.msra.mxu0 0.0
        %396 = vmatpush.msra.mxu0 0.0
        %397 = vmatpush.msra.mxu0 0.0
        %398 = vmatpush.msra.mxu0 0.0
        %399 = vmatpush.msra.mxu0 0.0
        %400 = vmatpush.msra.mxu0 0.0
        %401 = vmatpush.msra.mxu0 0.0
        %402 = vmatpush.msra.mxu0 0.0
        %403 = vmatpush.msra.mxu0 0.0
        %404 = vmatpush.msra.mxu0 %v316
        %405 = vmatmul.f32.gmra.mxu0 %v387
        %v406 = vpop.f32.mrf.mxu0
        %v407 = vadd.f32 0.0, %v406
        %408 = vdwg.mxu0
        %v409 = vadd.f32 %v385, %v407
        %410 = vst.msk [vmem:[#allocation4] sm:$0xff] %vm327, %v409
        %411 = vst.msk [vmem:[#allocation2] sm:$0xff] %vm377, %v359
        // Predicated region
        $region49: #{tpu_custom_call.1} parent=31 // pred_check
          %p412 = pneg %p317
        $region50: #{tpu_custom_call.1} parent=31 // pred_check_branch
          %414 = sbr.rel (%p412) target = $region52
        $region51: #{tpu_custom_call.1} parent=31 // pred_region
          %v415 = vld [vmem:[#allocation3] sm:$0xff]
          %v416 = vrcp.pop %v415
          %v417 = vmul.f32 %v415, %v416
          %v418 = vsub.f32 1.0, %v417
          %v419 = vmul.f32 %v416, %v418
          %v420 = vadd.f32 %v416, %v419
          %vm421 = vweird.f32 %v415
          %vm422 = vweird.f32 %v416
          %vm423 = vmor %vm421, %vm422
          %v424 = vsel %vm423, %v416, %v420
          %v425 = vand.u32 2147483647, %v415
          %vm426 = vcmp.eq.f32.partialorder %v425, 8.507059e+37
          %v427 = vand.u32 %v415, 2147483648
          %v428 = vor.u32 1.1754944e-38, %v427
          %v429 = vsel %vm426, %v428, %v424
          %v430 = vld [vmem:[#allocation4] sm:$0xff]
          %432 = vset.pattern.permute.xlu0 0
          %433 = vperm.xlu0 %432, %v429
          %v434 = vpop.permute.xlu0 %433
          %v436 = vmul.f32 %v430, %v434
          %437 = vst.msk [vmem:[%s313] sm:$0xff] %vm327, %v436
        $region52: #{tpu_custom_call.1} parent=31 // pred_fallthru
          _
        %s438 = sand.u32 %s151, 1
        %s439 = scalar_lea.sflag [#allocation7], %s438
        %s440 = sand.u32 %s151, 1
        %s441 = smul.addr %s440, 8
        %s442 = scalar_lea.vmem [#allocation11], %s441
        // Predicated region
        $region53: #{tpu_custom_call.1} parent=31 // pred_check
          %p443 = pneg %p161
        $region54: #{tpu_custom_call.1} parent=31 // pred_check_branch
          %445 = sbr.rel (%p443) target = $region56
        $region55: #{tpu_custom_call.1} parent=31 // pred_region
          %447 = vsyncadd %s439, 0
          %s448 = sadd.s32 %s31, %s30
          %s449 = smul.addr %s29, 4
          %s450 = sadd.s32 %s448, %s449
          %s451 = smul.addr %s450, 8
          %s452 = scalar_lea.hbm %s3, %s451
          %s454 = sshll.u32 %s442, 4
          %s455 = int_to_ptr.vmem [resolvable:$true] %s454
          %s456 = sshll.u32 %s452, 4
          %s457 = int_to_ptr.hbm [resolvable:$true] %s456
          %459 = dma.vmem_to_hbm [thread:$0]  %s455, 128, %s457, %s439
        $region56: #{tpu_custom_call.1} parent=31 // pred_fallthru
          _
      $region32: #{tpu_custom_call.1} parent=5 // pred_fallthru
        _
      %p460 = scmp.le.s32.totalorder 2, %s18
      // Predicated region
      $region57: #{tpu_custom_call.1} parent=5 // pred_check
        %p461 = pneg %p460
      $region58: #{tpu_custom_call.1} parent=5 // pred_check_branch
        %463 = sbr.rel (%p461) target = $region60
      $region59: #{tpu_custom_call.1} parent=5 // pred_region
        %s464 = ssub.s32 %s18, 2
        // Predicated region
        $region61: #{tpu_custom_call.1} parent=59 // pred_check
          %p465 = pneg %p167
        $region62: #{tpu_custom_call.1} parent=59 // pred_check_branch
          %467 = sbr.rel (%p465) target = $region64
        $region63: #{tpu_custom_call.1} parent=59 // pred_region
          %s468 = sand.u32 %s152, 1
          %s469 = scalar_lea.sflag [#allocation7], %s468
          %s470 = sand.u32 %s152, 1
          %s471 = smul.addr %s470, 8
          %s472 = scalar_lea.vmem [#allocation11], %s471
          %474 = dma.done %s469, 128
        $region64: #{tpu_custom_call.1} parent=59 // pred_fallthru
          _
      $region60: #{tpu_custom_call.1} parent=5 // pred_fallthru
        _
    $region6: #{tpu_custom_call.1} parent=1 // loop_footer
      %s22 = sadd.s32 1, %s18
    $region7: #{tpu_custom_call.1} parent=1 // loop_footer_branch
      %17 = sbr.rel target = $region3
    $region8: #{tpu_custom_call.1} parent=1 // loop_exit
      _
    %475 = vsyncpa [#allocation6], 1
    %s476 = scalar_lea.sflag [#allocation6], 1
    %477 = vsyncpa %s476, 1
    %478 = vsyncpa [#allocation9], 1
    %s479 = scalar_lea.sflag [#allocation9], 1
    %480 = vsyncpa %s479, 1
    %481 = vsyncpa [#allocation7], 1
    %s482 = scalar_lea.sflag [#allocation7], 1
    %483 = vsyncpa %s482, 1

</llo_original>
